<compile_context>
chip_gen: v6e
topology: v6e:2x2x1
jax: 0.10.0
libtpu: 0.0.40
codegen_flags: <defaults>
</compile_context>

<pallas_src>
import math

import jax
import jax.numpy as jnp
from jax.experimental import pallas as pl
from jax.experimental.pallas import tpu as pltpu

_LANE = 128
_MAX_LANE_WIDTH = 2048            # cap on the folded lane width L
_TILE_BYTES = 4 * 1024 * 1024     # per-buffer f32 tile budget (double-buffered)
_SPLIT_BYTES = 2 * 1024 * 1024    # slab size above which we force >= 2 grid steps


def _round_up(a: int, b: int) -> int:
    return -(-a // b) * b


def _affine_fwd_kernel(exp_scale_ref, shift_ref, x_ref, y_ref):
    # exp_scale_ref, shift_ref: (1, L) resident rows (dim params tiled to L lanes)
    # x_ref, y_ref:             (tile_r, L) tiles of the folded input / output
    x = x_ref[...].astype(jnp.float32)                    # fused dtype promotion
    y = x * exp_scale_ref[...] + shift_ref[...]
    y_ref[...] = y.astype(y_ref.dtype)


def affine_forward(x, scale, shift, out_dtype=None):
    """Pallas TPU forward pass of the deepchem `Affine` flow layer.

    Returns (y, log_det_jacobian): y.shape == x.shape, log_det.shape == (N,).
    y defaults to float32 (torch promotion against the float parameters);
    pass out_dtype=jnp.bfloat16 to keep a bf16 output and cut write traffic.
    """
    if x.ndim != 2:
        raise ValueError("affine_forward expects x of shape (samples, dim)")
    n, dim = x.shape
    if scale.shape != (dim,) or shift.shape != (dim,):
        raise ValueError("scale/shift must have shape (dim,)")
    if out_dtype is None:
        out_dtype = jnp.float32  # NOTE: f64 inputs are truncated to f32.

    scale = scale.astype(jnp.float32)
    shift = shift.astype(jnp.float32)
    exp_scale = jnp.exp(scale)

    # log|det J| is a per-row constant: a full-width XLA fill is already optimal,
    # so it never touches the kernel (and never produces masked stores).
    log_det = jnp.full((n,), jnp.sum(scale), dtype=jnp.float32)

    # ---- lane-dense folded layout ------------------------------------------
    lcm = dim * _LANE // math.gcd(dim, _LANE)
    if lcm <= _MAX_LANE_WIDTH:
        L, k, dim_pad = lcm, lcm // dim, 0
    else:
        # Feature-padding fallback: zero-pad the feature axis to a multiple of
        # 128 so stores stay unmasked (exp(0)=1, shift=0 keep pad lanes inert).
        L = _round_up(dim, _LANE)
        k, dim_pad = 1, L - dim

    if dim_pad:
        exp_scale_k = jnp.concatenate(
            [exp_scale, jnp.ones((dim_pad,), jnp.float32)])
        shift_k = jnp.concatenate([shift, jnp.zeros((dim_pad,), jnp.float32)])
        x_kern = jnp.pad(x, ((0, 0), (0, dim_pad)))
    else:
        exp_scale_k, shift_k, x_kern = exp_scale, shift, x
    exp_scale_row = jnp.tile(exp_scale_k, k).reshape(1, L)   # tiny O(L) ops
    shift_row = jnp.tile(shift_k, k).reshape(1, L)

    # ---- main body via the kernel; sub-fold tail via plain jnp --------------
    rows_main = n // k
    n_main = rows_main * k

    if rows_main == 0:
        # Fewer samples than one folded row: plain jnp is optimal (tiny).
        y = (x.astype(jnp.float32) * exp_scale + shift).astype(out_dtype)
        return y, log_det

    x_main = x_kern if n_main == n else x_kern[:n_main]
    x_folded = x_main.reshape(rows_main, L)   # free (bitcast) when n_main == n

    # ---- row-tile / grid sizing ---------------------------------------------
    rows_budget = max(32, (_TILE_BYTES // (L * 4)) // 32 * 32)
    slab_bytes = rows_main * L * 4
    if slab_bytes <= _SPLIT_BYTES or rows_main <= 32:
        tile_r, grid_rows = rows_main, 1        # full-extent block (legal)
    else:
        # >= 2 roughly balanced steps so both v7x TensorCores get work; cap
        # each buffer near 4 MiB so double-buffering fits every generation.
        half = _round_up(-(-rows_main // 2), 32)
        tile_r = min(rows_budget, half)
        grid_rows = -(-rows_main // tile_r)     # partial last block is masked

    x_itemsize = jnp.dtype(x.dtype).itemsize
    y_itemsize = jnp.dtype(out_dtype).itemsize
    vmem_need = 2 * tile_r * L * (x_itemsize + y_itemsize) + 4 * L * 4
    vmem_limit = max(32 * 1024 * 1024, int(vmem_need * 3 // 2))

    cost = pl.CostEstimate(
        flops=2 * rows_main * L,
        transcendentals=0,
        bytes_accessed=rows_main * L * (x_itemsize + y_itemsize) + 2 * L * 4,
    )

    y_folded = pl.pallas_call(
        _affine_fwd_kernel,
        out_shape=jax.ShapeDtypeStruct((rows_main, L), out_dtype),
        grid=(grid_rows,),
        in_specs=[
            pl.BlockSpec((1, L), lambda i: (0, 0)),        # exp(scale), tiled
            pl.BlockSpec((1, L), lambda i: (0, 0)),        # shift, tiled
            pl.BlockSpec((tile_r, L), lambda i: (i, 0)),   # x (folded)
        ],
        out_specs=pl.BlockSpec((tile_r, L), lambda i: (i, 0)),  # y (folded)
        compiler_params=pltpu.CompilerParams(
            dimension_semantics=("parallel",),
            vmem_limit_bytes=vmem_limit,
        ),
        cost_estimate=cost,
    )(exp_scale_row, shift_row, x_folded)

    y_main = y_folded.reshape(n_main, L // k)
    if dim_pad:
        y_main = y_main[:, :dim]

    if n_main == n:
        return y_main, log_det

    # < k trailing samples (< L elements total): plain jnp, then one concat.
    y_tail = (x[n_main:].astype(jnp.float32) * exp_scale + shift).astype(out_dtype)
    return jnp.concatenate([y_main, y_tail], axis=0), log_det
    # TODO(synk): inverse pass x = (y - shift) / exp(scale) not implemented
    # (only the forward pass was requested).


if __name__ == "__main__":
    key = jax.random.PRNGKey(0)
    k1, k2, k3, k4, k5, k6, k7, k8, k9 = jax.random.split(key, 9)

    # --- Test 1: module docstring example (dim=2, samples=96), f32 ----------
    dim, samples = 2, 96
    x = jax.random.normal(k1, (samples, dim), dtype=jnp.float32)
    scale = 0.1 * jax.random.normal(k2, (dim,), dtype=jnp.float32)
    shift = 0.1 * jax.random.normal(k3, (dim,), dtype=jnp.float32)

    y, log_det = jax.block_until_ready(affine_forward(x, scale, shift))
    y_ref = jnp.exp(scale) * x + shift
    assert y.shape == x.shape and log_det.shape == (samples,)
    assert jnp.allclose(y, y_ref, atol=1e-6), "y mismatch vs reference"
    assert jnp.allclose(log_det, jnp.full((samples,), jnp.sum(scale)), atol=1e-6)

    # --- Test 2: bf16 input, unaligned N (sub-fold tail), grid > 1 ----------
    dim2, n2 = 40, 20005
    x2 = jax.random.normal(k4, (n2, dim2), dtype=jnp.bfloat16)
    scale2 = 0.1 * jax.random.normal(k5, (dim2,), dtype=jnp.float32)
    shift2 = 0.1 * jax.random.normal(k6, (dim2,), dtype=jnp.float32)
    y2, log_det2 = jax.block_until_ready(affine_forward(x2, scale2, shift2))
    y2_ref = jnp.exp(scale2) * x2.astype(jnp.float32) + shift2
    assert y2.shape == (n2, dim2) and log_det2.shape == (n2,)
    assert jnp.allclose(y2, y2_ref, atol=1e-5), "bf16 y mismatch vs reference"
    assert jnp.allclose(log_det2, jnp.full((n2,), jnp.sum(scale2)), atol=1e-6)

    # --- Test 3: feature-padding fallback (dim not folding to <= 2048) ------
    dim3, n3 = 136, 200
    x3 = jax.random.normal(k7, (n3, dim3), dtype=jnp.float32)
    scale3 = 0.1 * jax.random.normal(k8, (dim3,), dtype=jnp.float32)
    shift3 = 0.1 * jax.random.normal(k9, (dim3,), dtype=jnp.float32)
    y3, log_det3 = jax.block_until_ready(affine_forward(x3, scale3, shift3))
    y3_ref = jnp.exp(scale3) * x3 + shift3
    assert y3.shape == (n3, dim3) and log_det3.shape == (n3,)
    assert jnp.allclose(y3, y3_ref, atol=1e-6), "padded-dim y mismatch"
    assert jnp.allclose(log_det3, jnp.full((n3,), jnp.sum(scale3)), atol=1e-5)

    print("KERNEL_OK")
</pallas_src>

<mosaic_0001>
module attributes {stable_mosaic.version = 11 : i64} {
  func.func @_affine_fwd_kernel(%arg0: i32, %arg1: memref<1x128xf32, #tpu.memory_space<vmem>>, %arg2: memref<1x128xf32, #tpu.memory_space<vmem>>, %arg3: memref<1x128xf32, #tpu.memory_space<vmem>>, %arg4: memref<1x128xf32, #tpu.memory_space<vmem>>) attributes {dimension_semantics = [#tpu.dimension_semantics<parallel>], iteration_bounds = array<i64: 1>, scalar_prefetch = 0 : i64, scratch_operands = 0 : i64, tpu.core_type = #tpu.core_type<tc>, window_params = [{pipeline_mode = #tpu.pipeline_mode<synchronous>, transform_indices = @transform_0, window_bounds = array<i64: 1, 128>}, {pipeline_mode = #tpu.pipeline_mode<synchronous>, transform_indices = @transform_1, window_bounds = array<i64: 1, 128>}, {transform_indices = @transform_2, window_bounds = array<i64: 1, 128>}, {transform_indices = @transform_3, window_bounds = array<i64: 1, 128>}]} {
    %c0 = arith.constant 0 : index
    %c0_0 = arith.constant 0 : index
    %0 = vector.load %arg3[%c0, %c0_0] : memref<1x128xf32, #tpu.memory_space<vmem>>, vector<1x128xf32>
    %c0_1 = arith.constant 0 : index
    %c0_2 = arith.constant 0 : index
    %1 = vector.load %arg1[%c0_1, %c0_2] : memref<1x128xf32, #tpu.memory_space<vmem>>, vector<1x128xf32>
    %2 = arith.mulf %0, %1 : vector<1x128xf32>
    %c0_3 = arith.constant 0 : index
    %c0_4 = arith.constant 0 : index
    %3 = vector.load %arg2[%c0_3, %c0_4] : memref<1x128xf32, #tpu.memory_space<vmem>>, vector<1x128xf32>
    %4 = arith.addf %2, %3 : vector<1x128xf32>
    %c0_5 = arith.constant 0 : index
    %c0_6 = arith.constant 0 : index
    %5 = vector.load %arg4[%c0_5, %c0_6] : memref<1x128xf32, #tpu.memory_space<vmem>>, vector<1x128xf32>
    tpu.vector_store %arg4[%c0_5, %c0_6], %4 {strides = array<i32>} : memref<1x128xf32, #tpu.memory_space<vmem>>, vector<1x128xf32>,
    return
  }
  func.func @transform_0(%arg0: i32) -> (i32, i32) {
    %c0_i32 = arith.constant 0 : i32
    %c0_i32_0 = arith.constant 0 : i32
    %c0_i32_1 = arith.constant 0 : i32
    return %c0_i32, %c0_i32_0 : i32, i32
  }
  func.func @transform_1(%arg0: i32) -> (i32, i32) {
    %c0_i32 = arith.constant 0 : i32
    %c0_i32_0 = arith.constant 0 : i32
    %c0_i32_1 = arith.constant 0 : i32
    return %c0_i32, %c0_i32_0 : i32, i32
  }
  func.func @transform_2(%arg0: i32) -> (i32, i32) {
    %c0_i32 = arith.constant 0 : i32
    %c0_i32_0 = arith.constant 0 : i32
    return %arg0, %c0_i32 : i32, i32
  }
  func.func @transform_3(%arg0: i32) -> (i32, i32) {
    %c0_i32 = arith.constant 0 : i32
    %c0_i32_0 = arith.constant 0 : i32
    return %arg0, %c0_i32 : i32, i32
  }
}

</mosaic_0001>

<llo_original>
// kernel: tpu_custom_call.1
$region0: #{tpu_custom_call.1}
  #allocation0 [shape = 'u32[]', space=smem, size = 0x4, offset = 0x4, fixed_abs, tag = 'smem constant byte address 0x4 - core index']
  #allocation1 [shape = 'u32[144,128]{1,0:T(1,128)}', space=vmem, size = 0x12000, scoped, tag = 'internal scratch']
  %s0 = inlined_call_operand.hbm [shape: f32[1,128], index: 0, kind: input, shape index: {}]
  %s1 = inlined_call_operand.vmem [shape: f32[1,128], index: 1, kind: input, shape index: {}]
  %s2 = inlined_call_operand.vmem [shape: f32[1,128], index: 2, kind: input, shape index: {}]
  %s3 = inlined_call_operand.hbm [shape: f32[1,128], index: 3, kind: output, shape index: {}]
  %s4 = sld [smem:[#allocation0]]
  $region26: #{tpu_custom_call.1} parent=0
    _
  %s6 = ssub.s32 1, %s4
  %s7 = scalar_select 0, %s6, %s4
  $region1: #{tpu_custom_call.1} parent=0
    #allocation2 [shape = 'u8[512]{0}', space=vmem, size = 0x400, scoped, tag = 'input window, operand 0, single buffered']
    #allocation3 [shape = 's32[1]{0}', space=sflag, size = 0x4, scoped, tag = 'scoped memory for tpu_custom_call.1']
    #allocation4 [shape = 's32[1]{0}', space=sflag, size = 0x4, scoped, tag = 'scoped memory for tpu_custom_call.1']
    #allocation5 [shape = 'u8[512]{0}', space=vmem, size = 0x400, scoped, tag = 'output window, operand 0, single buffered']
    %8 = vsyncpa [#allocation3], 0
    %9 = vsyncpa [#allocation4], 0
    // Predicated region
    $region2: #{tpu_custom_call.1} parent=1 // pred_check
      _
    $region3: #{tpu_custom_call.1} parent=1 // pred_check_branch
      %11 = sbr.rel (0) target = $region5
    $region4: #{tpu_custom_call.1} parent=1 // pred_region
      %s13 = ssub.s32 16, 16
      %14 = vsyncadd [#allocation3], %s13
      %s16 = sshll.u32 [#allocation2], 4
      %s17 = int_to_ptr.vmem [resolvable:$true] %s16
      %19 = dma.hbm_to_vmem [thread:$0]  %s0, 16, %s17, [#allocation3]
    $region5: #{tpu_custom_call.1} parent=1 // pred_fallthru
      _
    // Predicated region
    $region6: #{tpu_custom_call.1} parent=1 // pred_check
      _
    $region7: #{tpu_custom_call.1} parent=1 // pred_check_branch
      %21 = sbr.rel (0) target = $region9
    $region8: #{tpu_custom_call.1} parent=1 // pred_region
      _
    $region9: #{tpu_custom_call.1} parent=1 // pred_fallthru
      _
    // Predicated region
    $region10: #{tpu_custom_call.1} parent=1 // pred_check
      _
    $region11: #{tpu_custom_call.1} parent=1 // pred_check_branch
      %23 = sbr.rel (0) target = $region13
    $region12: #{tpu_custom_call.1} parent=1 // pred_region
      _
    $region13: #{tpu_custom_call.1} parent=1 // pred_fallthru
      _
    // Predicated region
    $region14: #{tpu_custom_call.1} parent=1 // pred_check
      _
    $region15: #{tpu_custom_call.1} parent=1 // pred_check_branch
      %25 = sbr.rel (0) target = $region17
    $region16: #{tpu_custom_call.1} parent=1 // pred_region
      %26 = dma.done [#allocation3], 16
    $region17: #{tpu_custom_call.1} parent=1 // pred_fallthru
      _
    %v27 = vld [vmem:[%s2] sm:$0x1]
    %v28 = vld [vmem:[#allocation2] sm:$0x1]
    %v29 = vmul.f32 %v27, %v28
    %v30 = vld [vmem:[%s1] sm:$0x1]
    %v31 = vadd.f32 %v29, %v30
    %32 = vst [vmem:[#allocation5] sm:$0x1] %v31
    // Predicated region
    $region18: #{tpu_custom_call.1} parent=1 // pred_check
      _
    $region19: #{tpu_custom_call.1} parent=1 // pred_check_branch
      %34 = sbr.rel (0) target = $region21
    $region20: #{tpu_custom_call.1} parent=1 // pred_region
      %s36 = ssub.s32 16, 16
      %37 = vsyncadd [#allocation4], %s36
      %s39 = sshll.u32 [#allocation5], 4
      %s40 = int_to_ptr.vmem [resolvable:$true] %s39
      %42 = dma.vmem_to_hbm [thread:$0]  %s40, 16, %s3, [#allocation4]
    $region21: #{tpu_custom_call.1} parent=1 // pred_fallthru
      _
    // Predicated region
    $region22: #{tpu_custom_call.1} parent=1 // pred_check
      _
    $region23: #{tpu_custom_call.1} parent=1 // pred_check_branch
      %44 = sbr.rel (0) target = $region25
    $region24: #{tpu_custom_call.1} parent=1 // pred_region
      %45 = dma.done [#allocation4], 16
    $region25: #{tpu_custom_call.1} parent=1 // pred_fallthru
      _
    %46 = vsyncpa [#allocation3], 1
    %47 = vsyncpa [#allocation4], 1

</llo_original>
